<compile_context>
chip_gen: v5e
topology: v5e:2x2
jax: 0.10.0
libtpu: 0.0.40
codegen_flags: <defaults>
</compile_context>

<pallas_src>
import numpy as np
import jax
import jax.numpy as jnp
from jax.experimental import pallas as pl
from jax.experimental.pallas import tpu as pltpu


def _round_up(x, m):
    return ((x + m - 1) // m) * m


def mlp_kernel(x_ref, w1_ref, b1_ref, w2_ref, b2_ref, o_ref):
    # fc1 on the MXU with f32 accumulation, bias + ReLU on the VPU, then fc2.
    h = jnp.dot(x_ref[...], w1_ref[...], preferred_element_type=jnp.float32)
    h = jnp.maximum(h + b1_ref[...], 0.0)               # (tb, H) + (1, H) broadcast
    y = jnp.dot(h.astype(w2_ref.dtype), w2_ref[...],
                preferred_element_type=jnp.float32)
    o_ref[...] = (y + b2_ref[...]).astype(o_ref.dtype)  # 128-lane dense store


def server_model_forward(x, w1, b1, w2, b2, *,
                         tile_b=None,
                         compute_dtype=None,
                         min_grid_steps=1,
                         core_parallel=False,
                         pack_output=True):
    """Fused fc1 -> ReLU -> fc2.

    x: (B, in); w1: (in, hid); b1: (hid,); w2: (hid, out); b2: (out,).

    compute_dtype: cast x/w1/w2 (e.g. jnp.bfloat16; worthwhile on v5e/v6e/v7x
      since x dominates HBM traffic). Biases, MXU accumulation and the returned
      output stay in the caller's dtype.
    min_grid_steps / core_parallel: on v7x pass min_grid_steps=2 (a multiple of
      2) and core_parallel=True so both TensorCores get a batch tile.
    pack_output: pack 128//out batch rows per lane row (block-diagonal weights)
      so loads/stores are lane-dense instead of masked narrow stores.
    """
    B, in_dim = x.shape
    hid = w1.shape[1]
    out = w2.shape[1]
    out_dtype = x.dtype                      # captured BEFORE any compute cast

    if compute_dtype is not None:
        x = x.astype(compute_dtype)
        w1 = w1.astype(compute_dtype)
        w2 = w2.astype(compute_dtype)

    # Lane-packing factor: out=16 -> 8 batch rows per 128-lane output row.
    pack = 128 // out if (pack_output and out < 128 and 128 % out == 0) else 1
    unit = 8 * pack                          # batch rows per 8-sublane block row

    # --- batch tiling --------------------------------------------------------
    # ~2k-row tiles amortize the ~0.35us/grid-step pipeline overhead; small B
    # collapses to a single tile (on v7x use min_grid_steps=2 instead).
    LARGE_TILE = 2048
    if tile_b is None:
        if B > LARGE_TILE * max(min_grid_steps, 1):
            tile_b = LARGE_TILE
        elif min_grid_steps > 1:
            tile_b = max(_round_up(-(-B // min_grid_steps), unit), unit)
        else:
            tile_b = _round_up(B, pack)      # one whole-batch tile, grid=(1,)
    else:
        tile_b = max(_round_up(tile_b, unit), unit)

    B_pad = _round_up(B, tile_b)             # pad, never a whole-batch fallback
    grid_steps = B_pad // tile_b
    if B_pad != B:
        x = jnp.pad(x, ((0, B_pad - B), (0, 0)))

    # --- wrapper-side lane packing (layout plumbing, no in-kernel relayout) ---
    if pack > 1:
        x_in = x.reshape(B_pad // pack, pack * in_dim)        # free: contiguous
        w1_in = jnp.kron(jnp.eye(pack, dtype=w1.dtype), w1)   # (pack*in, pack*hid)
        w2_in = jnp.kron(jnp.eye(pack, dtype=w2.dtype), w2)   # (pack*hid, 128)
        b1_in = jnp.tile(b1.astype(jnp.float32), pack).reshape(1, pack * hid)
        b2_in = jnp.tile(b2.astype(jnp.float32), pack).reshape(1, pack * out)
    else:
        x_in, w1_in, w2_in = x, w1, w2
        b1_in = b1.astype(jnp.float32).reshape(1, hid)
        b2_in = b2.astype(jnp.float32).reshape(1, out)

    rows, lanes_in = x_in.shape
    lanes_hid = w1_in.shape[1]
    lanes_out = w2_in.shape[1]
    tile_rows = tile_b // pack

    # --- specs ---------------------------------------------------------------
    single_io = (grid_steps == 1)

    def _spec(shape, index_map, single_buffer):
        # Buffered(1): grid-invariant (or single-step) blocks stay resident
        # without reserving a second pipeline buffer in VMEM.
        if single_buffer:
            return pl.BlockSpec(shape, index_map, pipeline_mode=pl.Buffered(1))
        return pl.BlockSpec(shape, index_map)

    grid_spec = pl.GridSpec(
        grid=(grid_steps,),
        in_specs=[
            _spec((tile_rows, lanes_in), lambda i: (i, 0), single_io),   # x tile
            _spec((lanes_in, lanes_hid), lambda i: (0, 0), True),        # W1
            _spec((1, lanes_hid),        lambda i: (0, 0), True),        # b1
            _spec((lanes_hid, lanes_out), lambda i: (0, 0), True),       # W2
            _spec((1, lanes_out),        lambda i: (0, 0), True),        # b2
        ],
        out_specs=_spec((tile_rows, lanes_out), lambda i: (i, 0), single_io),
    )

    if core_parallel and grid_steps > 1:
        dim_sem = (pltpu.CORE_PARALLEL,)     # v7x: shard batch tiles across TCs
    else:
        dim_sem = ("parallel",)

    # --- cost estimate & VMEM limit ------------------------------------------
    itemsize = np.dtype(x_in.dtype).itemsize
    out_itemsize = np.dtype(out_dtype).itemsize
    flops = 2 * rows * (lanes_in * lanes_hid + lanes_hid * lanes_out)
    bytes_accessed = (x_in.size * itemsize
                      + (w1_in.size + w2_in.size) * itemsize
                      + (b1_in.size + b2_in.size) * 4
                      + rows * lanes_out * out_itemsize)
    cost = pl.CostEstimate(flops=flops, transcendentals=0,
                           bytes_accessed=bytes_accessed)

    io_bufs = 1 if single_io else 2
    vmem_est = (tile_rows * lanes_in * itemsize * io_bufs
                + tile_rows * lanes_out * out_itemsize * io_bufs
                + (w1_in.size + w2_in.size) * itemsize
                + (b1_in.size + b2_in.size) * 4
                + tile_rows * lanes_hid * 4          # f32 hidden activation
                + (1 << 20))
    vmem_limit = int(min(2 * vmem_est, 48 << 20)) if vmem_est > (16 << 20) else None

    out_packed = pl.pallas_call(
        mlp_kernel,
        out_shape=jax.ShapeDtypeStruct((rows, lanes_out), out_dtype),
        grid_spec=grid_spec,
        compiler_params=pltpu.CompilerParams(
            dimension_semantics=dim_sem,
            vmem_limit_bytes=vmem_limit),
        cost_estimate=cost,
    )(x_in, w1_in, b1_in, w2_in, b2_in)

    # Reshape back (identical row-major bytes) and drop batch padding.
    # TODO(synk): when this MLP feeds a downstream op, fuse fc2 into that
    # consumer instead of a standalone call (preferred per review).
    return out_packed.reshape(B_pad, out)[:B]


if __name__ == "__main__":
    # Small shapes consistent with the module: input_size=32, hidden=64, output=16.
    B, input_size, hidden_size, output_size = 16, 32, 64, 16

    key = jax.random.PRNGKey(0)
    kx, kw1, kb1, kw2, kb2 = jax.random.split(key, 5)

    x = jax.random.normal(kx, (B, input_size), dtype=jnp.float32)
    # PyTorch Linear weight is (out, in); we store the transposed (in, out).
    w1 = jax.random.normal(kw1, (input_size, hidden_size), dtype=jnp.float32) * 0.1
    b1 = jax.random.normal(kb1, (hidden_size,), dtype=jnp.float32) * 0.1
    w2 = jax.random.normal(kw2, (hidden_size, output_size), dtype=jnp.float32) * 0.1
    b2 = jax.random.normal(kb2, (output_size,), dtype=jnp.float32) * 0.1

    ref = jnp.maximum(x @ w1 + b1, 0.0) @ w2 + b2

    # 1) fp32, single tile (grid=(1,)), lane-packed output.
    out = jax.block_until_ready(server_model_forward(x, w1, b1, w2, b2))
    assert out.shape == (B, output_size) and out.dtype == jnp.float32
    assert jnp.allclose(out, ref, atol=1e-5, rtol=1e-5), "fp32 mismatch vs reference"

    # 2) fp32, multi-step tiled path with a non-divisible batch (exercises the
    #    padded/pipelined BlockSpec path that replaced the whole-batch fallback).
    B2 = 200
    x2 = jax.random.normal(kx, (B2, input_size), dtype=jnp.float32)
    ref2 = jnp.maximum(x2 @ w1 + b1, 0.0) @ w2 + b2
    out2 = jax.block_until_ready(
        server_model_forward(x2, w1, b1, w2, b2, tile_b=128))
    assert out2.shape == (B2, output_size)
    assert jnp.allclose(out2, ref2, atol=1e-5, rtol=1e-5), "tiled fp32 mismatch"

    # 3) bf16 operands (serving path on v5e/v6e/v7x); f32 accumulation, f32 output.
    out_bf16 = jax.block_until_ready(
        server_model_forward(x, w1, b1, w2, b2, compute_dtype=jnp.bfloat16))
    assert out_bf16.dtype == jnp.float32
    assert jnp.allclose(out_bf16, ref, atol=5e-2, rtol=5e-2), "bf16 mismatch"

    print("KERNEL_OK")
</pallas_src>

<mosaic_0001>
module attributes {stable_mosaic.version = 11 : i64} {
  func.func @mlp_kernel(%arg0: i32, %arg1: memref<2x256xf32, #tpu.memory_space<vmem>>, %arg2: memref<256x512xf32, #tpu.memory_space<vmem>>, %arg3: memref<1x512xf32, #tpu.memory_space<vmem>>, %arg4: memref<512x128xf32, #tpu.memory_space<vmem>>, %arg5: memref<1x128xf32, #tpu.memory_space<vmem>>, %arg6: memref<2x128xf32, #tpu.memory_space<vmem>>) attributes {dimension_semantics = [#tpu.dimension_semantics<parallel>], iteration_bounds = array<i64: 1>, scalar_prefetch = 0 : i64, scratch_operands = 0 : i64, tpu.core_type = #tpu.core_type<tc>, window_params = [{pipeline_mode = #tpu.pipeline_mode<synchronous>, transform_indices = @transform_0, window_bounds = array<i64: 2, 256>}, {pipeline_mode = #tpu.pipeline_mode<synchronous>, transform_indices = @transform_1, window_bounds = array<i64: 256, 512>}, {pipeline_mode = #tpu.pipeline_mode<synchronous>, transform_indices = @transform_2, window_bounds = array<i64: 1, 512>}, {pipeline_mode = #tpu.pipeline_mode<synchronous>, transform_indices = @transform_3, window_bounds = array<i64: 512, 128>}, {pipeline_mode = #tpu.pipeline_mode<synchronous>, transform_indices = @transform_4, window_bounds = array<i64: 1, 128>}, {pipeline_mode = #tpu.pipeline_mode<synchronous>, transform_indices = @transform_5, window_bounds = array<i64: 2, 128>}]} {
    %c0 = arith.constant 0 : index
    %c0_0 = arith.constant 0 : index
    %0 = vector.load %arg1[%c0, %c0_0] : memref<2x256xf32, #tpu.memory_space<vmem>>, vector<2x256xf32>
    %c0_1 = arith.constant 0 : index
    %c0_2 = arith.constant 0 : index
    %1 = vector.load %arg2[%c0_1, %c0_2] : memref<256x512xf32, #tpu.memory_space<vmem>>, vector<256x512xf32>
    %cst = arith.constant dense<0.000000e+00> : vector<2x512xf32>
    %2 = tpu.matmul %0, %1, %cst {dimension_numbers = #tpu.dot_dimension_numbers<[1], [0], [0], [1], [0, 0, 1, 1], [], []>} : vector<2x256xf32>, vector<256x512xf32>, vector<2x512xf32> -> vector<2x512xf32>
    %c0_3 = arith.constant 0 : index
    %c0_4 = arith.constant 0 : index
    %3 = vector.load %arg3[%c0_3, %c0_4] : memref<1x512xf32, #tpu.memory_space<vmem>>, vector<1x512xf32>
    %4 = vector.broadcast %3 : vector<1x512xf32> to vector<2x512xf32>
    %5 = arith.addf %2, %4 : vector<2x512xf32>
    %cst_5 = arith.constant 0.000000e+00 : f32
    %6 = vector.broadcast %cst_5 : f32 to vector<2x512xf32>
    %7 = arith.maximumf %5, %6 : vector<2x512xf32>
    %c0_6 = arith.constant 0 : index
    %c0_7 = arith.constant 0 : index
    %8 = vector.load %arg4[%c0_6, %c0_7] : memref<512x128xf32, #tpu.memory_space<vmem>>, vector<512x128xf32>
    %cst_8 = arith.constant dense<0.000000e+00> : vector<2x128xf32>
    %9 = tpu.matmul %7, %8, %cst_8 {dimension_numbers = #tpu.dot_dimension_numbers<[1], [0], [0], [1], [0, 0, 1, 1], [], []>} : vector<2x512xf32>, vector<512x128xf32>, vector<2x128xf32> -> vector<2x128xf32>
    %c0_9 = arith.constant 0 : index
    %c0_10 = arith.constant 0 : index
    %10 = vector.load %arg5[%c0_9, %c0_10] : memref<1x128xf32, #tpu.memory_space<vmem>>, vector<1x128xf32>
    %11 = vector.broadcast %10 : vector<1x128xf32> to vector<2x128xf32>
    %12 = arith.addf %9, %11 : vector<2x128xf32>
    %c0_11 = arith.constant 0 : index
    %c0_12 = arith.constant 0 : index
    %13 = vector.load %arg6[%c0_11, %c0_12] : memref<2x128xf32, #tpu.memory_space<vmem>>, vector<2x128xf32>
    tpu.vector_store %arg6[%c0_11, %c0_12], %12 {strides = array<i32>} : memref<2x128xf32, #tpu.memory_space<vmem>>, vector<2x128xf32>,
    return
  }
  func.func @transform_0(%arg0: i32) -> (i32, i32) {
    %c0_i32 = arith.constant 0 : i32
    %c0_i32_0 = arith.constant 0 : i32
    return %arg0, %c0_i32 : i32, i32
  }
  func.func @transform_1(%arg0: i32) -> (i32, i32) {
    %c0_i32 = arith.constant 0 : i32
    %c0_i32_0 = arith.constant 0 : i32
    %c0_i32_1 = arith.constant 0 : i32
    return %c0_i32, %c0_i32_0 : i32, i32
  }
  func.func @transform_2(%arg0: i32) -> (i32, i32) {
    %c0_i32 = arith.constant 0 : i32
    %c0_i32_0 = arith.constant 0 : i32
    %c0_i32_1 = arith.constant 0 : i32
    return %c0_i32, %c0_i32_0 : i32, i32
  }
  func.func @transform_3(%arg0: i32) -> (i32, i32) {
    %c0_i32 = arith.constant 0 : i32
    %c0_i32_0 = arith.constant 0 : i32
    %c0_i32_1 = arith.constant 0 : i32
    return %c0_i32, %c0_i32_0 : i32, i32
  }
  func.func @transform_4(%arg0: i32) -> (i32, i32) {
    %c0_i32 = arith.constant 0 : i32
    %c0_i32_0 = arith.constant 0 : i32
    %c0_i32_1 = arith.constant 0 : i32
    return %c0_i32, %c0_i32_0 : i32, i32
  }
  func.func @transform_5(%arg0: i32) -> (i32, i32) {
    %c0_i32 = arith.constant 0 : i32
    %c0_i32_0 = arith.constant 0 : i32
    return %arg0, %c0_i32 : i32, i32
  }
}

</mosaic_0001>

<llo_original>
// kernel: tpu_custom_call.1
$region0: #{tpu_custom_call.1}
  #allocation0 [shape = 'u32[]', space=smem, size = 0x4, offset = 0x4, fixed_abs, tag = 'smem constant byte address 0x4 - core index']
  #allocation1 [shape = 'u32[72,128]{1,0:T(1,128)}', space=vmem, size = 0x9000, scoped, tag = 'internal scratch']
  %s0 = inlined_call_operand.hbm [shape: f32[2,256], index: 0, kind: input, shape index: {}]
  %s1 = inlined_call_operand.hbm [shape: f32[256,512], index: 1, kind: input, shape index: {}]
  %s2 = inlined_call_operand.hbm [shape: f32[1,512], index: 2, kind: input, shape index: {}]
  %s3 = inlined_call_operand.hbm [shape: f32[512,128], index: 3, kind: input, shape index: {}]
  %s4 = inlined_call_operand.vmem [shape: f32[1,128], index: 4, kind: input, shape index: {}]
  %s5 = inlined_call_operand.hbm [shape: f32[2,128], index: 5, kind: output, shape index: {}]
  %s6 = sld [smem:[#allocation0]]
  $region46: #{tpu_custom_call.1} parent=0
    _
  %s8 = ssub.s32 1, %s6
  %s9 = scalar_select 0, %s8, %s6
  $region1: #{tpu_custom_call.1} parent=0
    #allocation2 [shape = 'u8[2048]{0}', space=vmem, size = 0x800, scoped, tag = 'input window, operand 0, single buffered']
    #allocation3 [shape = 's32[1]{0}', space=sflag, size = 0x4, scoped, tag = 'scoped memory for tpu_custom_call.1']
    #allocation4 [shape = 's32[1]{0}', space=sflag, size = 0x4, scoped, tag = 'scoped memory for tpu_custom_call.1']
    #allocation5 [shape = 'u8[524288]{0}', space=vmem, size = 0x80000, scoped, tag = 'input window, operand 1, single buffered']
    #allocation6 [shape = 's32[1]{0}', space=sflag, size = 0x4, scoped, tag = 'scoped memory for tpu_custom_call.1']
    #allocation7 [shape = 'u8[2048]{0}', space=vmem, size = 0x800, scoped, tag = 'input window, operand 2, single buffered']
    #allocation8 [shape = 'u8[262144]{0}', space=vmem, size = 0x40000, scoped, tag = 'input window, operand 3, single buffered']
    #allocation9 [shape = 's32[1]{0}', space=sflag, size = 0x4, scoped, tag = 'scoped memory for tpu_custom_call.1']
    #allocation10 [shape = 'u8[1024]{0}', space=vmem, size = 0x400, scoped, tag = 'output window, operand 0, single buffered']
    %10 = vsyncpa [#allocation3], 0
    %11 = vsyncpa [#allocation6], 0
    %12 = vsyncpa [#allocation9], 0
    %13 = vsyncpa [#allocation4], 0
    // Predicated region
    $region2: #{tpu_custom_call.1} parent=1 // pred_check
      _
    $region3: #{tpu_custom_call.1} parent=1 // pred_check_branch
      %15 = sbr.rel (0) target = $region5
    $region4: #{tpu_custom_call.1} parent=1 // pred_region
      %17 = vsyncadd [#allocation3], 0
      %s19 = sshll.u32 %s0, 4
      %s20 = int_to_ptr.hbm [resolvable:$true] %s19
      %s21 = sshll.u32 [#allocation2], 4
      %s22 = int_to_ptr.vmem [resolvable:$true] %s21
      %24 = dma.hbm_to_vmem [thread:$0]  %s20, 64, %s22, [#allocation3]
    $region5: #{tpu_custom_call.1} parent=1 // pred_fallthru
      _
    // Predicated region
    $region6: #{tpu_custom_call.1} parent=1 // pred_check
      _
    $region7: #{tpu_custom_call.1} parent=1 // pred_check_branch
      %26 = sbr.rel (0) target = $region9
    $region8: #{tpu_custom_call.1} parent=1 // pred_region
      %28 = vsyncadd [#allocation6], 0
      %s29 = sshll.u32 %s1, 4
      %s30 = int_to_ptr.hbm [resolvable:$true] %s29
      %s31 = sshll.u32 [#allocation5], 4
      %s32 = int_to_ptr.vmem [resolvable:$true] %s31
      %37 = dma.hbm_to_vmem [thread:$0]  %s30, 16384, %s32, [#allocation6], 512, 512, 32
    $region9: #{tpu_custom_call.1} parent=1 // pred_fallthru
      _
    // Predicated region
    $region10: #{tpu_custom_call.1} parent=1 // pred_check
      _
    $region11: #{tpu_custom_call.1} parent=1 // pred_check_branch
      %39 = sbr.rel (0) target = $region13
    $region12: #{tpu_custom_call.1} parent=1 // pred_region
      %41 = vsyncadd [#allocation6], 0
      %s43 = sshll.u32 %s2, 4
      %s44 = int_to_ptr.hbm [resolvable:$true] %s43
      %s45 = sshll.u32 [#allocation7], 4
      %s46 = int_to_ptr.vmem [resolvable:$true] %s45
      %48 = dma.hbm_to_vmem [thread:$0]  %s44, 64, %s46, [#allocation6]
    $region13: #{tpu_custom_call.1} parent=1 // pred_fallthru
      _
    // Predicated region
    $region14: #{tpu_custom_call.1} parent=1 // pred_check
      _
    $region15: #{tpu_custom_call.1} parent=1 // pred_check_branch
      %50 = sbr.rel (0) target = $region17
    $region16: #{tpu_custom_call.1} parent=1 // pred_region
      %52 = vsyncadd [#allocation9], 0
      %s53 = sshll.u32 %s3, 4
      %s54 = int_to_ptr.hbm [resolvable:$true] %s53
      %s55 = sshll.u32 [#allocation8], 4
      %s56 = int_to_ptr.vmem [resolvable:$true] %s55
      %61 = dma.hbm_to_vmem [thread:$0]  %s54, 8192, %s56, [#allocation9], 128, 128, 8
    $region17: #{tpu_custom_call.1} parent=1 // pred_fallthru
      _
    // Predicated region
    $region18: #{tpu_custom_call.1} parent=1 // pred_check
      _
    $region19: #{tpu_custom_call.1} parent=1 // pred_check_branch
      %63 = sbr.rel (0) target = $region21
    $region20: #{tpu_custom_call.1} parent=1 // pred_region
      _
    $region21: #{tpu_custom_call.1} parent=1 // pred_fallthru
      _
    // Predicated region
    $region22: #{tpu_custom_call.1} parent=1 // pred_check
      _
    $region23: #{tpu_custom_call.1} parent=1 // pred_check_branch
      %65 = sbr.rel (0) target = $region25
    $region24: #{tpu_custom_call.1} parent=1 // pred_region
      %67 = dma.done [#allocation3], 64
    $region25: #{tpu_custom_call.1} parent=1 // pred_fallthru
      _
    // Predicated region
    $region26: #{tpu_custom_call.1} parent=1 // pred_check
      _
    $region27: #{tpu_custom_call.1} parent=1 // pred_check_branch
      %69 = sbr.rel (0) target = $region29
    $region28: #{tpu_custom_call.1} parent=1 // pred_region
      %71 = dma.done [#allocation6], 16384
    $region29: #{tpu_custom_call.1} parent=1 // pred_fallthru
      _
    // Predicated region
    $region30: #{tpu_custom_call.1} parent=1 // pred_check
      _
    $region31: #{tpu_custom_call.1} parent=1 // pred_check_branch
      %73 = sbr.rel (0) target = $region33
    $region32: #{tpu_custom_call.1} parent=1 // pred_region
      %75 = dma.done [#allocation6], 64
    $region33: #{tpu_custom_call.1} parent=1 // pred_fallthru
      _
    // Predicated region
    $region34: #{tpu_custom_call.1} parent=1 // pred_check
      _
    $region35: #{tpu_custom_call.1} parent=1 // pred_check_branch
      %77 = sbr.rel (0) target = $region37
    $region36: #{tpu_custom_call.1} parent=1 // pred_region
      %79 = dma.done [#allocation9], 8192
    $region37: #{tpu_custom_call.1} parent=1 // pred_fallthru
      _
    %v80 = vld [vmem:[#allocation2] sm:$0xf]
    %v81 = vld [vmem:[#allocation5] sm:$0xff]
    %v82 = vld [vmem:[#allocation5 + $0x8] sm:$0xff]
    %v83 = vld [vmem:[#allocation5 + $0x10] sm:$0xff]
    %v84 = vld [vmem:[#allocation5 + $0x18] sm:$0xff]
    %v85 = vld [vmem:[#allocation5 + $0x20] sm:$0xff]
    %v86 = vld [vmem:[#allocation5 + $0x28] sm:$0xff]
    %v87 = vld [vmem:[#allocation5 + $0x30] sm:$0xff]
    %v88 = vld [vmem:[#allocation5 + $0x38] sm:$0xff]
    %v89 = vld [vmem:[#allocation5 + $0x40] sm:$0xff]
    %v90 = vld [vmem:[#allocation5 + $0x48] sm:$0xff]
    %v91 = vld [vmem:[#allocation5 + $0x50] sm:$0xff]
    %v92 = vld [vmem:[#allocation5 + $0x58] sm:$0xff]
    %v93 = vld [vmem:[#allocation5 + $0x60] sm:$0xff]
    %v94 = vld [vmem:[#allocation5 + $0x68] sm:$0xff]
    %v95 = vld [vmem:[#allocation5 + $0x70] sm:$0xff]
    %v96 = vld [vmem:[#allocation5 + $0x78] sm:$0xff]
    %v97 = vld [vmem:[#allocation5 + $0x80] sm:$0xff]
    %v98 = vld [vmem:[#allocation5 + $0x88] sm:$0xff]
    %v99 = vld [vmem:[#allocation5 + $0x90] sm:$0xff]
    %v100 = vld [vmem:[#allocation5 + $0x98] sm:$0xff]
    %v101 = vld [vmem:[#allocation5 + $0xa0] sm:$0xff]
    %v102 = vld [vmem:[#allocation5 + $0xa8] sm:$0xff]
    %v103 = vld [vmem:[#allocation5 + $0xb0] sm:$0xff]
    %v104 = vld [vmem:[#allocation5 + $0xb8] sm:$0xff]
    %v105 = vld [vmem:[#allocation5 + $0xc0] sm:$0xff]
    %v106 = vld [vmem:[#allocation5 + $0xc8] sm:$0xff]
    %v107 = vld [vmem:[#allocation5 + $0xd0] sm:$0xff]
    %v108 = vld [vmem:[#allocation5 + $0xd8] sm:$0xff]
    %v109 = vld [vmem:[#allocation5 + $0xe0] sm:$0xff]
    %v110 = vld [vmem:[#allocation5 + $0xe8] sm:$0xff]
    %v111 = vld [vmem:[#allocation5 + $0xf0] sm:$0xff]
    %v112 = vld [vmem:[#allocation5 + $0xf8] sm:$0xff]
    %v113 = vld [vmem:[#allocation5 + $0x100] sm:$0xff]
    %v114 = vld [vmem:[#allocation5 + $0x108] sm:$0xff]
    %v115 = vld [vmem:[#allocation5 + $0x110] sm:$0xff]
    %v116 = vld [vmem:[#allocation5 + $0x118] sm:$0xff]
    %v117 = vld [vmem:[#allocation5 + $0x120] sm:$0xff]
    %v118 = vld [vmem:[#allocation5 + $0x128] sm:$0xff]
    %v119 = vld [vmem:[#allocation5 + $0x130] sm:$0xff]
    %v120 = vld [vmem:[#allocation5 + $0x138] sm:$0xff]
    %v121 = vld [vmem:[#allocation5 + $0x140] sm:$0xff]
    %v122 = vld [vmem:[#allocation5 + $0x148] sm:$0xff]
    %v123 = vld [vmem:[#allocation5 + $0x150] sm:$0xff]
    %v124 = vld [vmem:[#allocation5 + $0x158] sm:$0xff]
    %v125 = vld [vmem:[#allocation5 + $0x160] sm:$0xff]
    %v126 = vld [vmem:[#allocation5 + $0x168] sm:$0xff]
    %v127 = vld [vmem:[#allocation5 + $0x170] sm:$0xff]
    %v128 = vld [vmem:[#allocation5 + $0x178] sm:$0xff]
    %v129 = vld [vmem:[#allocation5 + $0x180] sm:$0xff]
    %v130 = vld [vmem:[#allocation5 + $0x188] sm:$0xff]
    %v131 = vld [vmem:[#allocation5 + $0x190] sm:$0xff]
    %v132 = vld [vmem:[#allocation5 + $0x198] sm:$0xff]
    %v133 = vld [vmem:[#allocation5 + $0x1a0] sm:$0xff]
    %v134 = vld [vmem:[#allocation5 + $0x1a8] sm:$0xff]
    %v135 = vld [vmem:[#allocation5 + $0x1b0] sm:$0xff]
    %v136 = vld [vmem:[#allocation5 + $0x1b8] sm:$0xff]
    %v137 = vld [vmem:[#allocation5 + $0x1c0] sm:$0xff]
    %v138 = vld [vmem:[#allocation5 + $0x1c8] sm:$0xff]
    %v139 = vld [vmem:[#allocation5 + $0x1d0] sm:$0xff]
    %v140 = vld [vmem:[#allocation5 + $0x1d8] sm:$0xff]
    %v141 = vld [vmem:[#allocation5 + $0x1e0] sm:$0xff]
    %v142 = vld [vmem:[#allocation5 + $0x1e8] sm:$0xff]
    %v143 = vld [vmem:[#allocation5 + $0x1f0] sm:$0xff]
    %v144 = vld [vmem:[#allocation5 + $0x1f8] sm:$0xff]
    %v145 = vld [vmem:[#allocation5 + $0x200] sm:$0xff]
    %v146 = vld [vmem:[#allocation5 + $0x208] sm:$0xff]
    %v147 = vld [vmem:[#allocation5 + $0x210] sm:$0xff]
    %v148 = vld [vmem:[#allocation5 + $0x218] sm:$0xff]
    %v149 = vld [vmem:[#allocation5 + $0x220] sm:$0xff]
    %v150 = vld [vmem:[#allocation5 + $0x228] sm:$0xff]
    %v151 = vld [vmem:[#allocation5 + $0x230] sm:$0xff]
    %v152 = vld [vmem:[#allocation5 + $0x238] sm:$0xff]
    %v153 = vld [vmem:[#allocation5 + $0x240] sm:$0xff]
    %v154 = vld [vmem:[#allocation5 + $0x248] sm:$0xff]
    %v155 = vld [vmem:[#allocation5 + $0x250] sm:$0xff]
    %v156 = vld [vmem:[#allocation5 + $0x258] sm:$0xff]
    %v157 = vld [vmem:[#allocation5 + $0x260] sm:$0xff]
    %v158 = vld [vmem:[#allocation5 + $0x268] sm:$0xff]
    %v159 = vld [vmem:[#allocation5 + $0x270] sm:$0xff]
    %v160 = vld [vmem:[#allocation5 + $0x278] sm:$0xff]
    %v161 = vld [vmem:[#allocation5 + $0x280] sm:$0xff]
    %v162 = vld [vmem:[#allocation5 + $0x288] sm:$0xff]
    %v163 = vld [vmem:[#allocation5 + $0x290] sm:$0xff]
    %v164 = vld [vmem:[#allocation5 + $0x298] sm:$0xff]
    %v165 = vld [vmem:[#allocation5 + $0x2a0] sm:$0xff]
    %v166 = vld [vmem:[#allocation5 + $0x2a8] sm:$0xff]
    %v167 = vld [vmem:[#allocation5 + $0x2b0] sm:$0xff]
    %v168 = vld [vmem:[#allocation5 + $0x2b8] sm:$0xff]
    %v169 = vld [vmem:[#allocation5 + $0x2c0] sm:$0xff]
    %v170 = vld [vmem:[#allocation5 + $0x2c8] sm:$0xff]
    %v171 = vld [vmem:[#allocation5 + $0x2d0] sm:$0xff]
    %v172 = vld [vmem:[#allocation5 + $0x2d8] sm:$0xff]
    %v173 = vld [vmem:[#allocation5 + $0x2e0] sm:$0xff]
    %v174 = vld [vmem:[#allocation5 + $0x2e8] sm:$0xff]
    %v175 = vld [vmem:[#allocation5 + $0x2f0] sm:$0xff]
    %v176 = vld [vmem:[#allocation5 + $0x2f8] sm:$0xff]
    %v177 = vld [vmem:[#allocation5 + $0x300] sm:$0xff]
    %v178 = vld [vmem:[#allocation5 + $0x308] sm:$0xff]
    %v179 = vld [vmem:[#allocation5 + $0x310] sm:$0xff]
    %v180 = vld [vmem:[#allocation5 + $0x318] sm:$0xff]
    %v181 = vld [vmem:[#allocation5 + $0x320] sm:$0xff]
    %v182 = vld [vmem:[#allocation5 + $0x328] sm:$0xff]
    %v183 = vld [vmem:[#allocation5 + $0x330] sm:$0xff]
    %v184 = vld [vmem:[#allocation5 + $0x338] sm:$0xff]
    %v185 = vld [vmem:[#allocation5 + $0x340] sm:$0xff]
    %v186 = vld [vmem:[#allocation5 + $0x348] sm:$0xff]
    %v187 = vld [vmem:[#allocation5 + $0x350] sm:$0xff]
    %v188 = vld [vmem:[#allocation5 + $0x358] sm:$0xff]
    %v189 = vld [vmem:[#allocation5 + $0x360] sm:$0xff]
    %v190 = vld [vmem:[#allocation5 + $0x368] sm:$0xff]
    %v191 = vld [vmem:[#allocation5 + $0x370] sm:$0xff]
    %v192 = vld [vmem:[#allocation5 + $0x378] sm:$0xff]
    %v193 = vld [vmem:[#allocation5 + $0x380] sm:$0xff]
    %v194 = vld [vmem:[#allocation5 + $0x388] sm:$0xff]
    %v195 = vld [vmem:[#allocation5 + $0x390] sm:$0xff]
    %v196 = vld [vmem:[#allocation5 + $0x398] sm:$0xff]
    %v197 = vld [vmem:[#allocation5 + $0x3a0] sm:$0xff]
    %v198 = vld [vmem:[#allocation5 + $0x3a8] sm:$0xff]
    %v199 = vld [vmem:[#allocation5 + $0x3b0] sm:$0xff]
    %v200 = vld [vmem:[#allocation5 + $0x3b8] sm:$0xff]
    %v201 = vld [vmem:[#allocation5 + $0x3c0] sm:$0xff]
    %v202 = vld [vmem:[#allocation5 + $0x3c8] sm:$0xff]
    %v203 = vld [vmem:[#allocation5 + $0x3d0] sm:$0xff]
    %v204 = vld [vmem:[#allocation5 + $0x3d8] sm:$0xff]
    %v205 = vld [vmem:[#allocation5 + $0x3e0] sm:$0xff]
    %v206 = vld [vmem:[#allocation5 + $0x3e8] sm:$0xff]
    %v207 = vld [vmem:[#allocation5 + $0x3f0] sm:$0xff]
    %v208 = vld [vmem:[#allocation5 + $0x3f8] sm:$0xff]
    %v209 = vld [vmem:[#allocation7] sm:$0xf]
    %v211 = vperm.slane %v209, 0
    %v212 = vperm.slane %v209, 1
    %v213 = vperm.slane %v209, 2
    %v214 = vperm.slane %v209, 3
    %220 = vst [vmem:[#allocation1] ss:$4 sm:$0xff] %v80
    %v221 = vld.sshfl [vmem:[#allocation1] sm:$0xff pattern:$0x73625140]
    %v222 = vld.sshfl [vmem:[#allocation1 + $0x8] sm:$0xff pattern:$0x73625140]
    %225 = vmatpush.msra.mxu0 %v141
    %226 = vmatpush.msra.mxu0 %v137
    %227 = vmatpush.msra.mxu0 %v133
    %228 = vmatpush.msra.mxu0 %v129
    %229 = vmatpush.msra.mxu0 %v125
    %230 = vmatpush.msra.mxu0 %v121
    %231 = vmatpush.msra.mxu0 %v117
    %232 = vmatpush.msra.mxu0 %v113
    %233 = vmatpush.msra.mxu0 %v109
    %234 = vmatpush.msra.mxu0 %v105
    %235 = vmatpush.msra.mxu0 %v101
    %236 = vmatpush.msra.mxu0 %v97
    %237 = vmatpush.msra.mxu0 %v93
    %238 = vmatpush.msra.mxu0 %v89
    %239 = vmatpush.msra.mxu0 %v85
    %240 = vmatpush.msra.mxu0 %v81
    %241 = vmatmul.f32.gmra.mxu0 %v221
    %v242 = vpop.f32.mrf.mxu0
    %v243 = vadd.f32 %v211, %v242
    %244 = vdwg.mxu0
    %245 = vmatpush.msra.mxu0 %v205
    %246 = vmatpush.msra.mxu0 %v201
    %247 = vmatpush.msra.mxu0 %v197
    %248 = vmatpush.msra.mxu0 %v193
    %249 = vmatpush.msra.mxu0 %v189
    %250 = vmatpush.msra.mxu0 %v185
    %251 = vmatpush.msra.mxu0 %v181
    %252 = vmatpush.msra.mxu0 %v177
    %253 = vmatpush.msra.mxu0 %v173
    %254 = vmatpush.msra.mxu0 %v169
    %255 = vmatpush.msra.mxu0 %v165
    %256 = vmatpush.msra.mxu0 %v161
    %257 = vmatpush.msra.mxu0 %v157
    %258 = vmatpush.msra.mxu0 %v153
    %259 = vmatpush.msra.mxu0 %v149
    %260 = vmatpush.msra.mxu0 %v145
    %261 = vmatmul.f32.gmra.mxu0 %v222
    %v262 = vpop.f32.mrf.mxu0
    %v263 = vadd.f32 %v243, %v262
    %264 = vdwg.mxu0
    %265 = vmatpush.msra.mxu0 %v142
    %266 = vmatpush.msra.mxu0 %v138
    %267 = vmatpush.msra.mxu0 %v134
    %268 = vmatpush.msra.mxu0 %v130
    %269 = vmatpush.msra.mxu0 %v126
    %270 = vmatpush.msra.mxu0 %v122
    %271 = vmatpush.msra.mxu0 %v118
    %272 = vmatpush.msra.mxu0 %v114
    %273 = vmatpush.msra.mxu0 %v110
    %274 = vmatpush.msra.mxu0 %v106
    %275 = vmatpush.msra.mxu0 %v102
    %276 = vmatpush.msra.mxu0 %v98
    %277 = vmatpush.msra.mxu0 %v94
    %278 = vmatpush.msra.mxu0 %v90
    %279 = vmatpush.msra.mxu0 %v86
    %280 = vmatpush.msra.mxu0 %v82
    %281 = vmatmul.f32.gmra.mxu0 %v221
    %v282 = vpop.f32.mrf.mxu0
    %v283 = vadd.f32 %v212, %v282
    %284 = vdwg.mxu0
    %285 = vmatpush.msra.mxu0 %v206
    %286 = vmatpush.msra.mxu0 %v202
    %287 = vmatpush.msra.mxu0 %v198
    %288 = vmatpush.msra.mxu0 %v194
    %289 = vmatpush.msra.mxu0 %v190
    %290 = vmatpush.msra.mxu0 %v186
    %291 = vmatpush.msra.mxu0 %v182
    %292 = vmatpush.msra.mxu0 %v178
    %293 = vmatpush.msra.mxu0 %v174
    %294 = vmatpush.msra.mxu0 %v170
    %295 = vmatpush.msra.mxu0 %v166
    %296 = vmatpush.msra.mxu0 %v162
    %297 = vmatpush.msra.mxu0 %v158
    %298 = vmatpush.msra.mxu0 %v154
    %299 = vmatpush.msra.mxu0 %v150
    %300 = vmatpush.msra.mxu0 %v146
    %301 = vmatmul.f32.gmra.mxu0 %v222
    %v302 = vpop.f32.mrf.mxu0
    %v303 = vadd.f32 %v283, %v302
    %304 = vdwg.mxu0
    %305 = vmatpush.msra.mxu0 %v143
    %306 = vmatpush.msra.mxu0 %v139
    %307 = vmatpush.msra.mxu0 %v135
    %308 = vmatpush.msra.mxu0 %v131
    %309 = vmatpush.msra.mxu0 %v127
    %310 = vmatpush.msra.mxu0 %v123
    %311 = vmatpush.msra.mxu0 %v119
    %312 = vmatpush.msra.mxu0 %v115
    %313 = vmatpush.msra.mxu0 %v111
    %314 = vmatpush.msra.mxu0 %v107
    %315 = vmatpush.msra.mxu0 %v103
    %316 = vmatpush.msra.mxu0 %v99
    %317 = vmatpush.msra.mxu0 %v95
    %318 = vmatpush.msra.mxu0 %v91
    %319 = vmatpush.msra.mxu0 %v87
    %320 = vmatpush.msra.mxu0 %v83
    %321 = vmatmul.f32.gmra.mxu0 %v221
    %v322 = vpop.f32.mrf.mxu0
    %v323 = vadd.f32 %v213, %v322
    %324 = vdwg.mxu0
    %325 = vmatpush.msra.mxu0 %v207
    %326 = vmatpush.msra.mxu0 %v203
    %327 = vmatpush.msra.mxu0 %v199
    %328 = vmatpush.msra.mxu0 %v195
    %329 = vmatpush.msra.mxu0 %v191
    %330 = vmatpush.msra.mxu0 %v187
    %331 = vmatpush.msra.mxu0 %v183
    %332 = vmatpush.msra.mxu0 %v179
    %333 = vmatpush.msra.mxu0 %v175
    %334 = vmatpush.msra.mxu0 %v171
    %335 = vmatpush.msra.mxu0 %v167
    %336 = vmatpush.msra.mxu0 %v163
    %337 = vmatpush.msra.mxu0 %v159
    %338 = vmatpush.msra.mxu0 %v155
    %339 = vmatpush.msra.mxu0 %v151
    %340 = vmatpush.msra.mxu0 %v147
    %341 = vmatmul.f32.gmra.mxu0 %v222
    %v342 = vpop.f32.mrf.mxu0
    %v343 = vadd.f32 %v323, %v342
    %344 = vdwg.mxu0
    %345 = vmatpush.msra.mxu0 %v144
    %346 = vmatpush.msra.mxu0 %v140
    %347 = vmatpush.msra.mxu0 %v136
    %348 = vmatpush.msra.mxu0 %v132
    %349 = vmatpush.msra.mxu0 %v128
    %350 = vmatpush.msra.mxu0 %v124
    %351 = vmatpush.msra.mxu0 %v120
    %352 = vmatpush.msra.mxu0 %v116
    %353 = vmatpush.msra.mxu0 %v112
    %354 = vmatpush.msra.mxu0 %v108
    %355 = vmatpush.msra.mxu0 %v104
    %356 = vmatpush.msra.mxu0 %v100
    %357 = vmatpush.msra.mxu0 %v96
    %358 = vmatpush.msra.mxu0 %v92
    %359 = vmatpush.msra.mxu0 %v88
    %360 = vmatpush.msra.mxu0 %v84
    %361 = vmatmul.f32.gmra.mxu0 %v221
    %v362 = vpop.f32.mrf.mxu0
    %v363 = vadd.f32 %v214, %v362
    %364 = vdwg.mxu0
    %365 = vmatpush.msra.mxu0 %v208
    %366 = vmatpush.msra.mxu0 %v204
    %367 = vmatpush.msra.mxu0 %v200
    %368 = vmatpush.msra.mxu0 %v196
    %369 = vmatpush.msra.mxu0 %v192
    %370 = vmatpush.msra.mxu0 %v188
    %371 = vmatpush.msra.mxu0 %v184
    %372 = vmatpush.msra.mxu0 %v180
    %373 = vmatpush.msra.mxu0 %v176
    %374 = vmatpush.msra.mxu0 %v172
    %375 = vmatpush.msra.mxu0 %v168
    %376 = vmatpush.msra.mxu0 %v164
    %377 = vmatpush.msra.mxu0 %v160
    %378 = vmatpush.msra.mxu0 %v156
    %379 = vmatpush.msra.mxu0 %v152
    %380 = vmatpush.msra.mxu0 %v148
    %381 = vmatmul.f32.gmra.mxu0 %v222
    %v382 = vpop.f32.mrf.mxu0
    %v383 = vadd.f32 %v363, %v382
    %384 = vdwg.mxu0
    %v385 = vmax.f32 %v263, 0.0
    %v386 = vmax.f32 %v303, 0.0
    %v387 = vmax.f32 %v343, 0.0
    %v388 = vmax.f32 %v383, 0.0
    %v389 = vld [vmem:[#allocation8] sm:$0xff]
    %v390 = vld [vmem:[#allocation8 + $0x8] sm:$0xff]
    %v391 = vld [vmem:[#allocation8 + $0x10] sm:$0xff]
    %v392 = vld [vmem:[#allocation8 + $0x18] sm:$0xff]
    %v393 = vld [vmem:[#allocation8 + $0x20] sm:$0xff]
    %v394 = vld [vmem:[#allocation8 + $0x28] sm:$0xff]
    %v395 = vld [vmem:[#allocation8 + $0x30] sm:$0xff]
    %v396 = vld [vmem:[#allocation8 + $0x38] sm:$0xff]
    %v397 = vld [vmem:[#allocation8 + $0x40] sm:$0xff]
    %v398 = vld [vmem:[#allocation8 + $0x48] sm:$0xff]
    %v399 = vld [vmem:[#allocation8 + $0x50] sm:$0xff]
    %v400 = vld [vmem:[#allocation8 + $0x58] sm:$0xff]
    %v401 = vld [vmem:[#allocation8 + $0x60] sm:$0xff]
    %v402 = vld [vmem:[#allocation8 + $0x68] sm:$0xff]
    %v403 = vld [vmem:[#allocation8 + $0x70] sm:$0xff]
    %v404 = vld [vmem:[#allocation8 + $0x78] sm:$0xff]
    %v405 = vld [vmem:[#allocation8 + $0x80] sm:$0xff]
    %v406 = vld [vmem:[#allocation8 + $0x88] sm:$0xff]
    %v407 = vld [vmem:[#allocation8 + $0x90] sm:$0xff]
    %v408 = vld [vmem:[#allocation8 + $0x98] sm:$0xff]
    %v409 = vld [vmem:[#allocation8 + $0xa0] sm:$0xff]
    %v410 = vld [vmem:[#allocation8 + $0xa8] sm:$0xff]
    %v411 = vld [vmem:[#allocation8 + $0xb0] sm:$0xff]
    %v412 = vld [vmem:[#allocation8 + $0xb8] sm:$0xff]
    %v413 = vld [vmem:[#allocation8 + $0xc0] sm:$0xff]
    %v414 = vld [vmem:[#allocation8 + $0xc8] sm:$0xff]
    %v415 = vld [vmem:[#allocation8 + $0xd0] sm:$0xff]
    %v416 = vld [vmem:[#allocation8 + $0xd8] sm:$0xff]
    %v417 = vld [vmem:[#allocation8 + $0xe0] sm:$0xff]
    %v418 = vld [vmem:[#allocation8 + $0xe8] sm:$0xff]
    %v419 = vld [vmem:[#allocation8 + $0xf0] sm:$0xff]
    %v420 = vld [vmem:[#allocation8 + $0xf8] sm:$0xff]
    %v421 = vld [vmem:[#allocation8 + $0x100] sm:$0xff]
    %v422 = vld [vmem:[#allocation8 + $0x108] sm:$0xff]
    %v423 = vld [vmem:[#allocation8 + $0x110] sm:$0xff]
    %v424 = vld [vmem:[#allocation8 + $0x118] sm:$0xff]
    %v425 = vld [vmem:[#allocation8 + $0x120] sm:$0xff]
    %v426 = vld [vmem:[#allocation8 + $0x128] sm:$0xff]
    %v427 = vld [vmem:[#allocation8 + $0x130] sm:$0xff]
    %v428 = vld [vmem:[#allocation8 + $0x138] sm:$0xff]
    %v429 = vld [vmem:[#allocation8 + $0x140] sm:$0xff]
    %v430 = vld [vmem:[#allocation8 + $0x148] sm:$0xff]
    %v431 = vld [vmem:[#allocation8 + $0x150] sm:$0xff]
    %v432 = vld [vmem:[#allocation8 + $0x158] sm:$0xff]
    %v433 = vld [vmem:[#allocation8 + $0x160] sm:$0xff]
    %v434 = vld [vmem:[#allocation8 + $0x168] sm:$0xff]
    %v435 = vld [vmem:[#allocation8 + $0x170] sm:$0xff]
    %v436 = vld [vmem:[#allocation8 + $0x178] sm:$0xff]
    %v437 = vld [vmem:[#allocation8 + $0x180] sm:$0xff]
    %v438 = vld [vmem:[#allocation8 + $0x188] sm:$0xff]
    %v439 = vld [vmem:[#allocation8 + $0x190] sm:$0xff]
    %v440 = vld [vmem:[#allocation8 + $0x198] sm:$0xff]
    %v441 = vld [vmem:[#allocation8 + $0x1a0] sm:$0xff]
    %v442 = vld [vmem:[#allocation8 + $0x1a8] sm:$0xff]
    %v443 = vld [vmem:[#allocation8 + $0x1b0] sm:$0xff]
    %v444 = vld [vmem:[#allocation8 + $0x1b8] sm:$0xff]
    %v445 = vld [vmem:[#allocation8 + $0x1c0] sm:$0xff]
    %v446 = vld [vmem:[#allocation8 + $0x1c8] sm:$0xff]
    %v447 = vld [vmem:[#allocation8 + $0x1d0] sm:$0xff]
    %v448 = vld [vmem:[#allocation8 + $0x1d8] sm:$0xff]
    %v449 = vld [vmem:[#allocation8 + $0x1e0] sm:$0xff]
    %v450 = vld [vmem:[#allocation8 + $0x1e8] sm:$0xff]
    %v451 = vld [vmem:[#allocation8 + $0x1f0] sm:$0xff]
    %v452 = vld [vmem:[#allocation8 + $0x1f8] sm:$0xff]
    %v453 = vld [vmem:[%s4] sm:$0x1]
    %v455 = vperm.slane %v453, 0
    %457 = vmatpush.msra.mxu0 %v404
    %458 = vmatpush.msra.mxu0 %v403
    %459 = vmatpush.msra.mxu0 %v402
    %460 = vmatpush.msra.mxu0 %v401
    %461 = vmatpush.msra.mxu0 %v400
    %462 = vmatpush.msra.mxu0 %v399
    %463 = vmatpush.msra.mxu0 %v398
    %464 = vmatpush.msra.mxu0 %v397
    %465 = vmatpush.msra.mxu0 %v396
    %466 = vmatpush.msra.mxu0 %v395
    %467 = vmatpush.msra.mxu0 %v394
    %468 = vmatpush.msra.mxu0 %v393
    %469 = vmatpush.msra.mxu0 %v392
    %470 = vmatpush.msra.mxu0 %v391
    %471 = vmatpush.msra.mxu0 %v390
    %472 = vmatpush.msra.mxu0 %v389
    %473 = vmatmul.f32.gmra.mxu0 %v385
    %v474 = vpop.f32.mrf.mxu0
    %v475 = vadd.f32 %v455, %v474
    %476 = vdwg.mxu0
    %477 = vmatpush.msra.mxu0 %v420
    %478 = vmatpush.msra.mxu0 %v419
    %479 = vmatpush.msra.mxu0 %v418
    %480 = vmatpush.msra.mxu0 %v417
    %481 = vmatpush.msra.mxu0 %v416
    %482 = vmatpush.msra.mxu0 %v415
    %483 = vmatpush.msra.mxu0 %v414
    %484 = vmatpush.msra.mxu0 %v413
    %485 = vmatpush.msra.mxu0 %v412
    %486 = vmatpush.msra.mxu0 %v411
    %487 = vmatpush.msra.mxu0 %v410
    %488 = vmatpush.msra.mxu0 %v409
    %489 = vmatpush.msra.mxu0 %v408
    %490 = vmatpush.msra.mxu0 %v407
    %491 = vmatpush.msra.mxu0 %v406
    %492 = vmatpush.msra.mxu0 %v405
    %493 = vmatmul.f32.gmra.mxu0 %v386
    %v494 = vpop.f32.mrf.mxu0
    %v495 = vadd.f32 %v475, %v494
    %496 = vdwg.mxu0
    %497 = vmatpush.msra.mxu0 %v436
    %498 = vmatpush.msra.mxu0 %v435
    %499 = vmatpush.msra.mxu0 %v434
    %500 = vmatpush.msra.mxu0 %v433
    %501 = vmatpush.msra.mxu0 %v432
    %502 = vmatpush.msra.mxu0 %v431
    %503 = vmatpush.msra.mxu0 %v430
    %504 = vmatpush.msra.mxu0 %v429
    %505 = vmatpush.msra.mxu0 %v428
    %506 = vmatpush.msra.mxu0 %v427
    %507 = vmatpush.msra.mxu0 %v426
    %508 = vmatpush.msra.mxu0 %v425
    %509 = vmatpush.msra.mxu0 %v424
    %510 = vmatpush.msra.mxu0 %v423
    %511 = vmatpush.msra.mxu0 %v422
    %512 = vmatpush.msra.mxu0 %v421
    %513 = vmatmul.f32.gmra.mxu0 %v387
    %v514 = vpop.f32.mrf.mxu0
    %v515 = vadd.f32 %v495, %v514
    %516 = vdwg.mxu0
    %517 = vmatpush.msra.mxu0 %v452
    %518 = vmatpush.msra.mxu0 %v451
    %519 = vmatpush.msra.mxu0 %v450
    %520 = vmatpush.msra.mxu0 %v449
    %521 = vmatpush.msra.mxu0 %v448
    %522 = vmatpush.msra.mxu0 %v447
    %523 = vmatpush.msra.mxu0 %v446
    %524 = vmatpush.msra.mxu0 %v445
    %525 = vmatpush.msra.mxu0 %v444
    %526 = vmatpush.msra.mxu0 %v443
    %527 = vmatpush.msra.mxu0 %v442
    %528 = vmatpush.msra.mxu0 %v441
    %529 = vmatpush.msra.mxu0 %v440
    %530 = vmatpush.msra.mxu0 %v439
    %531 = vmatpush.msra.mxu0 %v438
    %532 = vmatpush.msra.mxu0 %v437
    %533 = vmatmul.f32.gmra.mxu0 %v388
    %v534 = vpop.f32.mrf.mxu0
    %v535 = vadd.f32 %v515, %v534
    %536 = vdwg.mxu0
    %537 = vst [vmem:[#allocation10] sm:$0x3] %v535
    // Predicated region
    $region38: #{tpu_custom_call.1} parent=1 // pred_check
      _
    $region39: #{tpu_custom_call.1} parent=1 // pred_check_branch
      %539 = sbr.rel (0) target = $region41
    $region40: #{tpu_custom_call.1} parent=1 // pred_region
      %541 = vsyncadd [#allocation4], 0
      %s543 = sshll.u32 [#allocation10], 4
      %s544 = int_to_ptr.vmem [resolvable:$true] %s543
      %s545 = sshll.u32 %s5, 4
      %s546 = int_to_ptr.hbm [resolvable:$true] %s545
      %548 = dma.vmem_to_hbm [thread:$0]  %s544, 32, %s546, [#allocation4]
    $region41: #{tpu_custom_call.1} parent=1 // pred_fallthru
      _
    // Predicated region
    $region42: #{tpu_custom_call.1} parent=1 // pred_check
      _
    $region43: #{tpu_custom_call.1} parent=1 // pred_check_branch
      %550 = sbr.rel (0) target = $region45
    $region44: #{tpu_custom_call.1} parent=1 // pred_region
      %552 = dma.done [#allocation4], 32
    $region45: #{tpu_custom_call.1} parent=1 // pred_fallthru
      _
    %553 = vsyncpa [#allocation3], 1
    %554 = vsyncpa [#allocation6], 1
    %555 = vsyncpa [#allocation9], 1
    %556 = vsyncpa [#allocation4], 1

</llo_original>
